<compile_context>
chip_gen: v6e
topology: v6e:2x2x1
jax: 0.10.0
libtpu: 0.0.40
codegen_flags: <defaults>
</compile_context>

<pallas_src>
import jax
import jax.numpy as jnp
from jax.experimental import pallas as pl
from jax.experimental.pallas import tpu as pltpu

LANES = 128
TARGET_BLOCK_BYTES = 2 * 1024 * 1024  # ~2 MiB per block (v5e-safe with double buffering)


def _bounded_kernel(bounds_ref, x_ref, o_ref):
    x = x_ref[...]
    lo = bounds_ref[0].astype(x.dtype)
    hi = bounds_ref[1].astype(x.dtype)
    # F.threshold(x, lower, lower): keep x where x > lower, else lower (NaN -> lower)
    x = jnp.where(x > lo, x, lo)
    # -F.threshold(-x, -upper, -upper) == keep x where x < upper, else upper
    o_ref[...] = jnp.where(x < hi, x, hi)


def bounded(x, lower=0.0, upper=1.0):
    """Elementwise clamp of x (any shape) to [lower, upper] with PyTorch threshold semantics."""
    orig_shape = x.shape
    dtype = x.dtype
    n = x.size
    if n == 0:
        return x

    itemsize = jnp.dtype(dtype).itemsize
    # Sublane multiple for packed layouts (f32:8, bf16:16, int8/fp8:32).
    sub = {1: 32, 2: 16}.get(itemsize, 8)

    # Pick the widest lane-dense width that divides n exactly (no pad/copy).
    width = None
    for cand in (8192, 4096, 2048, 1024, 512, 256, LANES):
        if n % cand == 0:
            width = cand
            break

    if width is not None:
        pad = 0
        rows = n // width
        x2d = jnp.reshape(x, (rows, width))
    else:
        # Ragged size: minimal pad to a multiple of 128 lanes (single extra copy).
        width = LANES
        pad = (-n) % width
        flat = jnp.reshape(x, (-1,))
        flat = jnp.pad(flat, (0, pad))
        rows = (n + pad) // width
        x2d = jnp.reshape(flat, (rows, width))

    # Block sizing: ~TARGET_BLOCK_BYTES per block, rows a multiple of `sub`.
    max_block_rows = max(sub, (TARGET_BLOCK_BYTES // (width * itemsize)) // sub * sub)

    if rows <= max_block_rows:
        # Whole tensor fits in one block. If it is sizable and splits cleanly,
        # use two blocks so v7x can shard across its two TensorCores.
        if (rows % (2 * sub) == 0) and (rows * width * itemsize >= 512 * 1024):
            block_rows = rows // 2
            grid_rows = 2
        else:
            block_rows = rows  # full-extent block (always layout-legal)
            grid_rows = 1
    else:
        block_rows = max_block_rows
        grid_rows = pl.cdiv(rows, block_rows)  # edge block masked by Pallas

    bounds = jnp.array([lower, upper], dtype=jnp.float32)

    y2d = pl.pallas_call(
        _bounded_kernel,
        out_shape=jax.ShapeDtypeStruct((rows, width), dtype),
        grid_spec=pltpu.PrefetchScalarGridSpec(
            num_scalar_prefetch=1,
            grid=(grid_rows,),
            in_specs=[pl.BlockSpec((block_rows, width), lambda i, bounds: (i, 0))],
            out_specs=pl.BlockSpec((block_rows, width), lambda i, bounds: (i, 0)),
        ),
        compiler_params=pltpu.CompilerParams(
            dimension_semantics=("parallel",),
        ),
    )(bounds, x2d)

    if pad == 0:
        return jnp.reshape(y2d, orig_shape)
    return jnp.reshape(jnp.reshape(y2d, (-1,))[:n], orig_shape)


def _ref_bounded(x, lower, upper):
    # Pure-JAX reference with identical PyTorch threshold semantics.
    lo = jnp.asarray(lower, dtype=x.dtype)
    hi = jnp.asarray(upper, dtype=x.dtype)
    x = jnp.where(x > lo, x, lo)
    return jnp.where(x < hi, x, hi)


if __name__ == "__main__":
    key = jax.random.PRNGKey(0)
    lower, upper = 0.0, 1.0

    # 1) Small NCHW input consistent with the DnCNN-style network this belongs to.
    k0, k1 = jax.random.split(key)
    x = jax.random.normal(k0, (2, 4, 16, 16), dtype=jnp.float32) * 2.0
    y = jax.block_until_ready(bounded(x, lower=lower, upper=upper))
    ref = _ref_bounded(x, lower, upper)
    assert y.shape == x.shape and y.dtype == x.dtype
    assert bool(jnp.array_equal(y, ref)), "mismatch vs reference (aligned path)"

    # 2) Ragged element count exercises the minimal-pad fallback path.
    x2 = jax.random.normal(k1, (3, 5, 7), dtype=jnp.float32) * 2.0
    y2 = jax.block_until_ready(bounded(x2, lower=lower, upper=upper))
    ref2 = _ref_bounded(x2, lower, upper)
    assert y2.shape == x2.shape and y2.dtype == x2.dtype
    assert bool(jnp.array_equal(y2, ref2)), "mismatch vs reference (ragged path)"

    # 3) Non-trivial bounds + values exactly at the bounds (strict-inequality check).
    x3 = jnp.array([[-2.0, -0.5, -0.5, 0.0, 0.3, 0.7, 0.7, 5.0] * 16] * 8,
                   dtype=jnp.float32)
    y3 = jax.block_until_ready(bounded(x3, lower=-0.5, upper=0.7))
    ref3 = _ref_bounded(x3, -0.5, 0.7)
    assert bool(jnp.array_equal(y3, ref3)), "mismatch vs reference (bounds path)"

    print("KERNEL_OK")
</pallas_src>

<mosaic_0001>
module attributes {stable_mosaic.version = 11 : i64} {
  func.func @_bounded_kernel(%arg0: i32, %arg1: memref<2xf32, #tpu.memory_space<smem>>, %arg2: memref<1x2048xf32, #tpu.memory_space<vmem>>, %arg3: memref<1x2048xf32, #tpu.memory_space<vmem>>) attributes {dimension_semantics = [#tpu.dimension_semantics<parallel>], iteration_bounds = array<i64: 1>, scalar_prefetch = 1 : i64, scratch_operands = 0 : i64, tpu.core_type = #tpu.core_type<tc>, window_params = [{transform_indices = @transform_0, window_bounds = array<i64: 1, 2048>}, {transform_indices = @transform_1, window_bounds = array<i64: 1, 2048>}]} {
    %c0 = arith.constant 0 : index
    %c0_0 = arith.constant 0 : index
    %0 = vector.load %arg2[%c0, %c0_0] : memref<1x2048xf32, #tpu.memory_space<vmem>>, vector<1x2048xf32>
    %c0_1 = arith.constant 0 : index
    %1 = memref.load %arg1[%c0_1] : memref<2xf32, #tpu.memory_space<smem>>
    %c1 = arith.constant 1 : index
    %2 = memref.load %arg1[%c1] : memref<2xf32, #tpu.memory_space<smem>>
    %3 = vector.broadcast %1 : f32 to vector<1x2048xf32>
    %4 = arith.cmpf ogt, %0, %3 : vector<1x2048xf32>
    %5 = vector.broadcast %1 : f32 to vector<1x2048xf32>
    %6 = arith.select %4, %0, %5 : vector<1x2048xi1>, vector<1x2048xf32>
    %7 = vector.broadcast %2 : f32 to vector<1x2048xf32>
    %8 = arith.cmpf olt, %6, %7 : vector<1x2048xf32>
    %9 = vector.broadcast %2 : f32 to vector<1x2048xf32>
    %10 = arith.select %8, %6, %9 : vector<1x2048xi1>, vector<1x2048xf32>
    %c0_2 = arith.constant 0 : index
    %c0_3 = arith.constant 0 : index
    %11 = vector.load %arg3[%c0_2, %c0_3] : memref<1x2048xf32, #tpu.memory_space<vmem>>, vector<1x2048xf32>
    tpu.vector_store %arg3[%c0_2, %c0_3], %10 {strides = array<i32>} : memref<1x2048xf32, #tpu.memory_space<vmem>>, vector<1x2048xf32>,
    return
  }
  func.func @transform_0(%arg0: i32, %arg1: memref<2xf32, #tpu.memory_space<smem>>) -> (i32, i32) {
    %c0_i32 = arith.constant 0 : i32
    %c0_i32_0 = arith.constant 0 : i32
    return %arg0, %c0_i32 : i32, i32
  }
  func.func @transform_1(%arg0: i32, %arg1: memref<2xf32, #tpu.memory_space<smem>>) -> (i32, i32) {
    %c0_i32 = arith.constant 0 : i32
    %c0_i32_0 = arith.constant 0 : i32
    return %arg0, %c0_i32 : i32, i32
  }
}

</mosaic_0001>

<llo_original>
// kernel: tpu_custom_call.1
$region0: #{tpu_custom_call.1}
  #allocation0 [shape = 'u32[]', space=smem, size = 0x4, offset = 0x4, fixed_abs, tag = 'smem constant byte address 0x4 - core index']
  #allocation1 [shape = 'u32[144,128]{1,0:T(1,128)}', space=vmem, size = 0x12000, scoped, tag = 'internal scratch']
  #allocation2 [shape = 's32[1]{0}', space=sflag, size = 0x4, scoped, tag = 'scoped memory for tpu_custom_call.1']
  #allocation3 [shape = 'u8[512]{0}', space=smem, size = 0x200, scoped, tag = 'prefetched SMEM operand 0']
  %s0 = inlined_call_operand.hbm [shape: f32[2], index: 0, kind: input, shape index: {}]
  %s1 = inlined_call_operand.hbm [shape: f32[1,2048], index: 1, kind: input, shape index: {}]
  %s2 = inlined_call_operand.hbm [shape: f32[1,2048], index: 2, kind: output, shape index: {}]
  %s3 = sld [smem:[#allocation0]]
  $region18: #{tpu_custom_call.1} parent=0
    _
  %s5 = ssub.s32 1, %s3
  %s6 = scalar_select 0, %s5, %s3
  %8 = dma.hbm_to_smem %s0, 16, [#allocation3], [#allocation2]
  %9 = dma.done [#allocation2], 16
  %10 = sfence
  $region1: #{tpu_custom_call.1} parent=0
    #allocation4 [shape = 'u8[8192]{0}', space=vmem, size = 0x2000, scoped, tag = 'input window, operand 1, single buffered']
    #allocation5 [shape = 's32[1]{0}', space=sflag, size = 0x4, scoped, tag = 'scoped memory for tpu_custom_call.1']
    #allocation6 [shape = 's32[1]{0}', space=sflag, size = 0x4, scoped, tag = 'scoped memory for tpu_custom_call.1']
    #allocation7 [shape = 'u8[8192]{0}', space=vmem, size = 0x2000, scoped, tag = 'output window, operand 0, single buffered']
    %11 = vsyncpa [#allocation5], 0
    %12 = vsyncpa [#allocation6], 0
    // Predicated region
    $region2: #{tpu_custom_call.1} parent=1 // pred_check
      _
    $region3: #{tpu_custom_call.1} parent=1 // pred_check_branch
      %14 = sbr.rel (0) target = $region5
    $region4: #{tpu_custom_call.1} parent=1 // pred_region
      %s16 = ssub.s32 256, 256
      %17 = vsyncadd [#allocation5], %s16
      %s19 = sshll.u32 [#allocation4], 4
      %s20 = int_to_ptr.vmem [resolvable:$true] %s19
      %22 = dma.hbm_to_vmem [thread:$0]  %s1, 256, %s20, [#allocation5]
    $region5: #{tpu_custom_call.1} parent=1 // pred_fallthru
      _
    // Predicated region
    $region6: #{tpu_custom_call.1} parent=1 // pred_check
      _
    $region7: #{tpu_custom_call.1} parent=1 // pred_check_branch
      %24 = sbr.rel (0) target = $region9
    $region8: #{tpu_custom_call.1} parent=1 // pred_region
      %25 = dma.done [#allocation5], 256
    $region9: #{tpu_custom_call.1} parent=1 // pred_fallthru
      _
    %v26 = vld [vmem:[#allocation4] sm:$0xff]
    %v27 = vld [vmem:[#allocation4 + $0x8] sm:$0xff]
    %s28 = sld [smem:[#allocation3]]
    %s29 = sld [smem:[#allocation3 + $0x1]]
    %v30 = vstv %s28
    %vm31 = vcmp.gt.f32.partialorder %v26, %v30
    %vm32 = vcmp.gt.f32.partialorder %v27, %v30
    %v33 = vsel %vm31, %v26, %v30
    %v34 = vsel %vm32, %v27, %v30
    %v35 = vstv %s29
    %vm36 = vcmp.lt.f32.partialorder %v33, %v35
    %vm37 = vcmp.lt.f32.partialorder %v34, %v35
    %v38 = vsel %vm36, %v33, %v35
    %v39 = vsel %vm37, %v34, %v35
    %40 = vst [vmem:[#allocation7] sm:$0xff] %v38
    %41 = vst [vmem:[#allocation7 + $0x8] sm:$0xff] %v39
    // Predicated region
    $region10: #{tpu_custom_call.1} parent=1 // pred_check
      _
    $region11: #{tpu_custom_call.1} parent=1 // pred_check_branch
      %43 = sbr.rel (0) target = $region13
    $region12: #{tpu_custom_call.1} parent=1 // pred_region
      %s45 = ssub.s32 256, 256
      %46 = vsyncadd [#allocation6], %s45
      %s48 = sshll.u32 [#allocation7], 4
      %s49 = int_to_ptr.vmem [resolvable:$true] %s48
      %51 = dma.vmem_to_hbm [thread:$0]  %s49, 256, %s2, [#allocation6]
    $region13: #{tpu_custom_call.1} parent=1 // pred_fallthru
      _
    // Predicated region
    $region14: #{tpu_custom_call.1} parent=1 // pred_check
      _
    $region15: #{tpu_custom_call.1} parent=1 // pred_check_branch
      %53 = sbr.rel (0) target = $region17
    $region16: #{tpu_custom_call.1} parent=1 // pred_region
      %54 = dma.done [#allocation6], 256
    $region17: #{tpu_custom_call.1} parent=1 // pred_fallthru
      _
    %55 = vsyncpa [#allocation5], 1
    %56 = vsyncpa [#allocation6], 1

</llo_original>
